<compile_context>
chip_gen: v5e
topology: v5e:2x2
jax: 0.10.0
libtpu: 0.0.40
codegen_flags: <defaults>
</compile_context>

<pallas_src>
import functools

import jax
import jax.numpy as jnp
from jax.experimental import pallas as pl
from jax.experimental.pallas import tpu as pltpu

BN_EPS = 1e-5


# ---------------------------------------------------------------------------
# Kernel 1: hidden layer  h = tanh(x @ W1^T + b1)
# Single invocation (no grid) -- everything fits comfortably in VMEM.
# TODO(synk): Dropout is omitted (identity in eval mode).
# ---------------------------------------------------------------------------
def hidden_kernel(x_ref, w1_ref, b1_ref, h_ref):
    h_ref[...] = jnp.tanh(
        jnp.dot(x_ref[...], w1_ref[...], preferred_element_type=jnp.float32)
        + b1_ref[...]
    )


# ---------------------------------------------------------------------------
# Kernel 2: output layer  out = h @ W2' + b2'  (BatchNorm already folded in).
# Streams W2' tile-by-tile over the n_items axis (the only HBM-heavy term).
# ---------------------------------------------------------------------------
def out_layer_kernel(h_ref, w2_ref, b2_ref, o_ref):
    w2 = w2_ref[...]
    # Cast h to the weight dtype (bf16 feeds the MXU natively; no-op for f32),
    # accumulate in f32.
    h = h_ref[...].astype(w2.dtype)
    o_ref[...] = (
        jnp.dot(h, w2, preferred_element_type=jnp.float32) + b2_ref[...]
    )


def _pick_tile_n(n_items, want):
    """Largest tile <= want that divides n_items, preferring multiples of 128."""
    want = min(want, n_items)
    if n_items % want == 0 and (want % 128 == 0 or want == n_items):
        return want
    best = None
    for t in range(want, 0, -1):
        if n_items % t == 0:
            if t % 128 == 0:
                return t
            if best is None:
                best = t
    return best if best is not None else n_items


@functools.partial(jax.jit, static_argnames=("tile_n", "w2_dtype"))
def decoder_forward(x, w1_t, b1, gamma, beta, rm, rv, w2_t, b2,
                    *, tile_n=512, w2_dtype=jnp.bfloat16):
    B, k = x.shape
    hidden = w1_t.shape[1]
    n_items = w2_t.shape[1]

    # ---- Fold eval-mode BatchNorm into the output-layer weights (once) -----
    scale = gamma * jax.lax.rsqrt(rv + BN_EPS)          # (1, hidden)
    shift = beta - rm * scale                           # (1, hidden)
    w2_fold = (scale.reshape(hidden, 1) * w2_t).astype(w2_dtype)   # (hidden, n_items)
    b2_fold = (b2 + shift @ w2_t).astype(jnp.float32)              # (1, n_items)

    # ---- Layer 1: h = tanh(x @ W1 + b1), computed exactly once -------------
    h = pl.pallas_call(
        hidden_kernel,
        out_shape=jax.ShapeDtypeStruct((B, hidden), jnp.float32),
        cost_estimate=pl.CostEstimate(
            flops=2 * B * k * hidden,
            transcendentals=B * hidden,
            bytes_accessed=4 * (B * k + k * hidden + hidden + B * hidden)),
    )(x, w1_t, b1)

    # ---- Layer 2: streaming matmul tiled over n_items ----------------------
    tile = _pick_tile_n(n_items, tile_n)

    w2_bytes = jnp.dtype(w2_dtype).itemsize
    # Double-buffered tile budget, with headroom; clamp so it is safe on every
    # generation (v7x has only 64 MiB physical VMEM per TensorCore, v5e's
    # default scoped limit is 16 MiB).
    budget = (2 * hidden * tile * w2_bytes       # W2' tiles
              + 2 * B * tile * 4                 # out tiles
              + 2 * tile * 4                     # b2' tiles
              + 2 * B * hidden * 4)              # resident h
    vmem_limit = int(min(48 * 2**20, max(32 * 2**20, 2 * budget)))

    grid = (n_items // tile,)
    out = pl.pallas_call(
        out_layer_kernel,
        out_shape=jax.ShapeDtypeStruct((B, n_items), jnp.float32),
        grid_spec=pltpu.PrefetchScalarGridSpec(
            num_scalar_prefetch=0,
            grid=grid,
            in_specs=[
                pl.BlockSpec((B, hidden), lambda j: (0, 0)),      # h (resident)
                pl.BlockSpec((hidden, tile), lambda j: (0, j)),   # W2' tile
                pl.BlockSpec((1, tile), lambda j: (0, j)),        # b2' tile
            ],
            out_specs=pl.BlockSpec((B, tile), lambda j: (0, j)),
        ),
        compiler_params=pltpu.CompilerParams(
            dimension_semantics=("parallel",),
            vmem_limit_bytes=vmem_limit),
        cost_estimate=pl.CostEstimate(
            flops=2 * B * hidden * n_items,
            transcendentals=0,
            bytes_accessed=(hidden * n_items * w2_bytes
                            + n_items * 4
                            + B * n_items * 4
                            + B * hidden * 4)),
    )(h, w2_fold, b2_fold)
    return out


def reference_forward(x, w1_t, b1, gamma, beta, rm, rv, w2_t, b2):
    hdd = jnp.tanh(x @ w1_t + b1)
    hdd = (hdd - rm) * jax.lax.rsqrt(rv + BN_EPS) * gamma + beta
    return hdd @ w2_t + b2


if __name__ == "__main__":
    # Small shapes consistent with the module: k (latent) -> dense_layers=[64] -> n_items
    B, k, hidden, n_items = 8, 32, 64, 256

    key = jax.random.PRNGKey(0)
    keys = jax.random.split(key, 10)

    x = jax.random.normal(keys[0], (B, k), dtype=jnp.float32)

    # Linear(k, hidden): PyTorch weight shape (hidden, k); store transposed (k, hidden)
    w1 = jax.random.normal(keys[1], (hidden, k), dtype=jnp.float32) * 0.1
    b1 = jax.random.normal(keys[2], (1, hidden), dtype=jnp.float32) * 0.1
    w1_t = w1.T

    # BatchNorm1d(hidden) running stats / affine params (non-trivial so the
    # BN-folding path is actually exercised).
    gamma = 1.0 + 0.1 * jax.random.normal(keys[3], (1, hidden), dtype=jnp.float32)
    beta = 0.1 * jax.random.normal(keys[4], (1, hidden), dtype=jnp.float32)
    rm = 0.1 * jax.random.normal(keys[5], (1, hidden), dtype=jnp.float32)
    rv = jnp.abs(jax.random.normal(keys[6], (1, hidden), dtype=jnp.float32)) + 0.5

    # out_layer Linear(hidden, n_items)
    w2 = jax.random.normal(keys[7], (n_items, hidden), dtype=jnp.float32) * 0.1
    b2 = jax.random.normal(keys[8], (1, n_items), dtype=jnp.float32) * 0.1
    w2_t = w2.T

    ref = reference_forward(x, w1_t, b1, gamma, beta, rm, rv, w2_t, b2)

    # f32 weight path: tight tolerance (only BN-folding reassociation error).
    out_f32 = decoder_forward(x, w1_t, b1, gamma, beta, rm, rv, w2_t, b2,
                              w2_dtype=jnp.float32)
    out_f32 = jax.block_until_ready(out_f32)
    assert out_f32.shape == (B, n_items)
    assert jnp.allclose(out_f32, ref, atol=1e-4, rtol=1e-4), "f32 mismatch vs reference"

    # bf16 weight-streaming path (default): looser tolerance for bf16 weights
    # with f32 accumulation.
    out_bf16 = decoder_forward(x, w1_t, b1, gamma, beta, rm, rv, w2_t, b2)
    out_bf16 = jax.block_until_ready(out_bf16)
    assert out_bf16.shape == (B, n_items)
    assert jnp.allclose(out_bf16, ref, atol=3e-2, rtol=3e-2), "bf16 mismatch vs reference"

    print("KERNEL_OK")
</pallas_src>

<mosaic_0001>
module attributes {stable_mosaic.version = 11 : i64} {
  func.func @hidden_kernel(%arg0: memref<8x32xf32, #tpu.memory_space<vmem>>, %arg1: memref<32x64xf32, #tpu.memory_space<vmem>>, %arg2: memref<1x64xf32, #tpu.memory_space<vmem>>, %arg3: memref<8x64xf32, #tpu.memory_space<vmem>>) attributes {dimension_semantics = [], scalar_prefetch = 0 : i64, scratch_operands = 0 : i64, tpu.core_type = #tpu.core_type<tc>} {
    %c0 = arith.constant 0 : index
    %c0_0 = arith.constant 0 : index
    %0 = vector.load %arg0[%c0, %c0_0] : memref<8x32xf32, #tpu.memory_space<vmem>>, vector<8x32xf32>
    %c0_1 = arith.constant 0 : index
    %c0_2 = arith.constant 0 : index
    %1 = vector.load %arg1[%c0_1, %c0_2] : memref<32x64xf32, #tpu.memory_space<vmem>>, vector<32x64xf32>
    %cst = arith.constant dense<0.000000e+00> : vector<8x64xf32>
    %2 = tpu.matmul %0, %1, %cst {dimension_numbers = #tpu.dot_dimension_numbers<[1], [0], [0], [1], [0, 0, 1, 1], [], []>} : vector<8x32xf32>, vector<32x64xf32>, vector<8x64xf32> -> vector<8x64xf32>
    %c0_3 = arith.constant 0 : index
    %c0_4 = arith.constant 0 : index
    %3 = vector.load %arg2[%c0_3, %c0_4] : memref<1x64xf32, #tpu.memory_space<vmem>>, vector<1x64xf32>
    %4 = vector.broadcast %3 : vector<1x64xf32> to vector<8x64xf32>
    %5 = arith.addf %2, %4 : vector<8x64xf32>
    %6 = math.tanh %5 : vector<8x64xf32>
    %c0_5 = arith.constant 0 : index
    %c0_6 = arith.constant 0 : index
    %7 = vector.load %arg3[%c0_5, %c0_6] : memref<8x64xf32, #tpu.memory_space<vmem>>, vector<8x64xf32>
    tpu.vector_store %arg3[%c0_5, %c0_6], %6 {strides = array<i32>} : memref<8x64xf32, #tpu.memory_space<vmem>>, vector<8x64xf32>,
    return
  }
}

module attributes {stable_mosaic.version = 11 : i64} {
  func.func @out_layer_kernel(%arg0: i32, %arg1: memref<8x64xf32, #tpu.memory_space<vmem>>, %arg2: memref<64x256xf32, #tpu.memory_space<vmem>>, %arg3: memref<1x256xf32, #tpu.memory_space<vmem>>, %arg4: memref<8x256xf32, #tpu.memory_space<vmem>>) attributes {dimension_semantics = [#tpu.dimension_semantics<parallel>], iteration_bounds = array<i64: 1>, scalar_prefetch = 0 : i64, scratch_operands = 0 : i64, tpu.core_type = #tpu.core_type<tc>, window_params = [{pipeline_mode = #tpu.pipeline_mode<synchronous>, transform_indices = @transform_0, window_bounds = array<i64: 8, 64>}, {transform_indices = @transform_1, window_bounds = array<i64: 64, 256>}, {transform_indices = @transform_2, window_bounds = array<i64: 1, 256>}, {transform_indices = @transform_3, window_bounds = array<i64: 8, 256>}]} {
    %c0 = arith.constant 0 : index
    %c0_0 = arith.constant 0 : index
    %0 = vector.load %arg2[%c0, %c0_0] : memref<64x256xf32, #tpu.memory_space<vmem>>, vector<64x256xf32>
    %c0_1 = arith.constant 0 : index
    %c0_2 = arith.constant 0 : index
    %1 = vector.load %arg1[%c0_1, %c0_2] : memref<8x64xf32, #tpu.memory_space<vmem>>, vector<8x64xf32>
    %cst = arith.constant dense<0.000000e+00> : vector<8x256xf32>
    %2 = tpu.matmul %1, %0, %cst {dimension_numbers = #tpu.dot_dimension_numbers<[1], [0], [0], [1], [0, 0, 1, 1], [], []>} : vector<8x64xf32>, vector<64x256xf32>, vector<8x256xf32> -> vector<8x256xf32>
    %c0_3 = arith.constant 0 : index
    %c0_4 = arith.constant 0 : index
    %3 = vector.load %arg3[%c0_3, %c0_4] : memref<1x256xf32, #tpu.memory_space<vmem>>, vector<1x256xf32>
    %4 = vector.broadcast %3 : vector<1x256xf32> to vector<8x256xf32>
    %5 = arith.addf %2, %4 : vector<8x256xf32>
    %c0_5 = arith.constant 0 : index
    %c0_6 = arith.constant 0 : index
    %6 = vector.load %arg4[%c0_5, %c0_6] : memref<8x256xf32, #tpu.memory_space<vmem>>, vector<8x256xf32>
    tpu.vector_store %arg4[%c0_5, %c0_6], %5 {strides = array<i32>} : memref<8x256xf32, #tpu.memory_space<vmem>>, vector<8x256xf32>,
    return
  }
  func.func @transform_0(%arg0: i32) -> (i32, i32) {
    %c0_i32 = arith.constant 0 : i32
    %c0_i32_0 = arith.constant 0 : i32
    %c0_i32_1 = arith.constant 0 : i32
    return %c0_i32, %c0_i32_0 : i32, i32
  }
  func.func @transform_1(%arg0: i32) -> (i32, i32) {
    %c0_i32 = arith.constant 0 : i32
    %c0_i32_0 = arith.constant 0 : i32
    return %c0_i32, %arg0 : i32, i32
  }
  func.func @transform_2(%arg0: i32) -> (i32, i32) {
    %c0_i32 = arith.constant 0 : i32
    %c0_i32_0 = arith.constant 0 : i32
    return %c0_i32, %arg0 : i32, i32
  }
  func.func @transform_3(%arg0: i32) -> (i32, i32) {
    %c0_i32 = arith.constant 0 : i32
    %c0_i32_0 = arith.constant 0 : i32
    return %c0_i32, %arg0 : i32, i32
  }
}

</mosaic_0001>

<llo_original>
// kernel: decoder_forward.2
$region0: #{decoder_forward.2}
  #allocation0 [shape = 'u32[]', space=smem, size = 0x4, offset = 0x4, fixed_abs, tag = 'smem constant byte address 0x4 - core index']
  #allocation1 [shape = 'u32[72,128]{1,0:T(1,128)}', space=vmem, size = 0x9000, scoped, tag = 'internal scratch']
  %s0 = inlined_call_operand.hbm [shape: f32[8,32], index: 0, kind: input, shape index: {}]
  %s1 = inlined_call_operand.hbm [shape: f32[32,64], index: 1, kind: input, shape index: {}]
  %s2 = inlined_call_operand.vmem [shape: f32[1,64], index: 2, kind: input, shape index: {}]
  %s3 = inlined_call_operand.vmem [shape: f32[8,64], index: 3, kind: output, shape index: {}]
  %s4 = sld [smem:[#allocation0]]
  $region30: #{decoder_forward.2} parent=0
    _
  %s6 = ssub.s32 1, %s4
  %s7 = scalar_select 0, %s6, %s4
  $region1: #{decoder_forward.2} parent=0
    #allocation2 [shape = 'u8[4096]{0}', space=vmem, size = 0x1000, scoped, tag = 'input window, operand 0, single buffered']
    #allocation3 [shape = 's32[1]{0}', space=sflag, size = 0x4, scoped, tag = 'scoped memory for decoder_forward.2']
    #allocation4 [shape = 'u8[16384]{0}', space=vmem, size = 0x4000, scoped, tag = 'input window, operand 1, single buffered']
    #allocation5 [shape = 's32[1]{0}', space=sflag, size = 0x4, scoped, tag = 'scoped memory for decoder_forward.2']
    %8 = vsyncpa [#allocation3], 0
    %9 = vsyncpa [#allocation5], 0
    // Predicated region
    $region2: #{decoder_forward.2} parent=1 // pred_check
      _
    $region3: #{decoder_forward.2} parent=1 // pred_check_branch
      %11 = sbr.rel (0) target = $region5
    $region4: #{decoder_forward.2} parent=1 // pred_region
      %13 = vsyncadd [#allocation3], 0
      %s15 = sshll.u32 %s0, 4
      %s16 = int_to_ptr.hbm [resolvable:$true] %s15
      %s17 = sshll.u32 [#allocation2], 4
      %s18 = int_to_ptr.vmem [resolvable:$true] %s17
      %20 = dma.hbm_to_vmem [thread:$0]  %s16, 128, %s18, [#allocation3]
    $region5: #{decoder_forward.2} parent=1 // pred_fallthru
      _
    // Predicated region
    $region6: #{decoder_forward.2} parent=1 // pred_check
      _
    $region7: #{decoder_forward.2} parent=1 // pred_check_branch
      %22 = sbr.rel (0) target = $region9
    $region8: #{decoder_forward.2} parent=1 // pred_region
      %24 = vsyncadd [#allocation5], 0
      %s25 = sshll.u32 %s1, 4
      %s26 = int_to_ptr.hbm [resolvable:$true] %s25
      %s27 = sshll.u32 [#allocation4], 4
      %s28 = int_to_ptr.vmem [resolvable:$true] %s27
      %33 = dma.hbm_to_vmem [thread:$0]  %s26, 512, %s28, [#allocation5], 128, 128, 8
    $region9: #{decoder_forward.2} parent=1 // pred_fallthru
      _
    // Predicated region
    $region10: #{decoder_forward.2} parent=1 // pred_check
      _
    $region11: #{decoder_forward.2} parent=1 // pred_check_branch
      %35 = sbr.rel (0) target = $region13
    $region12: #{decoder_forward.2} parent=1 // pred_region
      _
    $region13: #{decoder_forward.2} parent=1 // pred_fallthru
      _
    // Predicated region
    $region14: #{decoder_forward.2} parent=1 // pred_check
      _
    $region15: #{decoder_forward.2} parent=1 // pred_check_branch
      %37 = sbr.rel (0) target = $region17
    $region16: #{decoder_forward.2} parent=1 // pred_region
      %39 = dma.done [#allocation3], 128
    $region17: #{decoder_forward.2} parent=1 // pred_fallthru
      _
    // Predicated region
    $region18: #{decoder_forward.2} parent=1 // pred_check
      _
    $region19: #{decoder_forward.2} parent=1 // pred_check_branch
      %41 = sbr.rel (0) target = $region21
    $region20: #{decoder_forward.2} parent=1 // pred_region
      %43 = dma.done [#allocation5], 512
    $region21: #{decoder_forward.2} parent=1 // pred_fallthru
      _
    %v44 = vld [vmem:[#allocation2] sm:$0xff]
    %v45 = vld [vmem:[#allocation4] sm:$0xff]
    %v46 = vld [vmem:[#allocation4 + $0x8] sm:$0xff]
    %v47 = vld [vmem:[#allocation4 + $0x10] sm:$0xff]
    %v48 = vld [vmem:[#allocation4 + $0x18] sm:$0xff]
    %v49 = vld [vmem:[%s2] sm:$0x1]
    %v51 = vperm.slane %v49, 0
    %vm53 = vcmask 261120
    %v55 = vsel %vm53, %v44, 0
    %57 = vmatpush.msra.mxu0 0.0
    %58 = vmatpush.msra.mxu0 0.0
    %59 = vmatpush.msra.mxu0 0.0
    %60 = vmatpush.msra.mxu0 0.0
    %61 = vmatpush.msra.mxu0 0.0
    %62 = vmatpush.msra.mxu0 0.0
    %63 = vmatpush.msra.mxu0 0.0
    %64 = vmatpush.msra.mxu0 0.0
    %65 = vmatpush.msra.mxu0 0.0
    %66 = vmatpush.msra.mxu0 0.0
    %67 = vmatpush.msra.mxu0 0.0
    %68 = vmatpush.msra.mxu0 0.0
    %69 = vmatpush.msra.mxu0 %v48
    %70 = vmatpush.msra.mxu0 %v47
    %71 = vmatpush.msra.mxu0 %v46
    %72 = vmatpush.msra.mxu0 %v45
    %73 = vmatmul.f32.gmra.mxu0 %v55
    %v74 = vpop.f32.mrf.mxu0
    %v75 = vadd.f32 %v51, %v74
    %76 = vdwg.mxu0
    %v77 = vtanh.pop %v75
    %vm78 = vcmask 523264
    %79 = vst.msk [vmem:[%s3] sm:$0xff] %vm78, %v77
    // Predicated region
    $region22: #{decoder_forward.2} parent=1 // pred_check
      _
    $region23: #{decoder_forward.2} parent=1 // pred_check_branch
      %81 = sbr.rel (0) target = $region25
    $region24: #{decoder_forward.2} parent=1 // pred_region
      _
    $region25: #{decoder_forward.2} parent=1 // pred_fallthru
      _
    // Predicated region
    $region26: #{decoder_forward.2} parent=1 // pred_check
      _
    $region27: #{decoder_forward.2} parent=1 // pred_check_branch
      %83 = sbr.rel (0) target = $region29
    $region28: #{decoder_forward.2} parent=1 // pred_region
      _
    $region29: #{decoder_forward.2} parent=1 // pred_fallthru
      _
    %84 = vsyncpa [#allocation3], 1
    %85 = vsyncpa [#allocation5], 1

// kernel: decoder_forward.3
$region0: #{decoder_forward.3}
  #allocation0 [shape = 'u32[]', space=smem, size = 0x4, offset = 0x4, fixed_abs, tag = 'smem constant byte address 0x4 - core index']
  #allocation1 [shape = 'u32[72,128]{1,0:T(1,128)}', space=vmem, size = 0x9000, scoped, tag = 'internal scratch']
  %s0 = inlined_call_operand.vmem [shape: f32[8,64], index: 0, kind: input, shape index: {}]
  %s1 = inlined_call_operand.vmem [shape: f32[64,256], index: 1, kind: input, shape index: {}]
  %s2 = inlined_call_operand.vmem [shape: f32[1,256], index: 2, kind: input, shape index: {}]
  %s3 = inlined_call_operand.hbm [shape: f32[8,256], index: 3, kind: output, shape index: {}]
  %s4 = sld [smem:[#allocation0]]
  $region22: #{decoder_forward.3} parent=0
    _
  %s6 = ssub.s32 1, %s4
  %s7 = scalar_select 0, %s6, %s4
  $region1: #{decoder_forward.3} parent=0
    #allocation2 [shape = 'u8[8192]{0}', space=vmem, size = 0x2000, scoped, tag = 'output window, operand 0, single buffered']
    #allocation3 [shape = 's32[1]{0}', space=sflag, size = 0x4, scoped, tag = 'scoped memory for decoder_forward.3']
    %8 = vsyncpa [#allocation3], 0
    // Predicated region
    $region2: #{decoder_forward.3} parent=1 // pred_check
      _
    $region3: #{decoder_forward.3} parent=1 // pred_check_branch
      %10 = sbr.rel (0) target = $region5
    $region4: #{decoder_forward.3} parent=1 // pred_region
      _
    $region5: #{decoder_forward.3} parent=1 // pred_fallthru
      _
    // Predicated region
    $region6: #{decoder_forward.3} parent=1 // pred_check
      _
    $region7: #{decoder_forward.3} parent=1 // pred_check_branch
      %12 = sbr.rel (0) target = $region9
    $region8: #{decoder_forward.3} parent=1 // pred_region
      _
    $region9: #{decoder_forward.3} parent=1 // pred_fallthru
      _
    // Predicated region
    $region10: #{decoder_forward.3} parent=1 // pred_check
      _
    $region11: #{decoder_forward.3} parent=1 // pred_check_branch
      %14 = sbr.rel (0) target = $region13
    $region12: #{decoder_forward.3} parent=1 // pred_region
      _
    $region13: #{decoder_forward.3} parent=1 // pred_fallthru
      _
    %v15 = vld [vmem:[%s1] sm:$0xff]
    %v16 = vld [vmem:[%s1 + $0x8] sm:$0xff]
    %v17 = vld [vmem:[%s1 + $0x10] sm:$0xff]
    %v18 = vld [vmem:[%s1 + $0x18] sm:$0xff]
    %v19 = vld [vmem:[%s1 + $0x20] sm:$0xff]
    %v20 = vld [vmem:[%s1 + $0x28] sm:$0xff]
    %v21 = vld [vmem:[%s1 + $0x30] sm:$0xff]
    %v22 = vld [vmem:[%s1 + $0x38] sm:$0xff]
    %v23 = vld [vmem:[%s1 + $0x40] sm:$0xff]
    %v24 = vld [vmem:[%s1 + $0x48] sm:$0xff]
    %v25 = vld [vmem:[%s1 + $0x50] sm:$0xff]
    %v26 = vld [vmem:[%s1 + $0x58] sm:$0xff]
    %v27 = vld [vmem:[%s1 + $0x60] sm:$0xff]
    %v28 = vld [vmem:[%s1 + $0x68] sm:$0xff]
    %v29 = vld [vmem:[%s1 + $0x70] sm:$0xff]
    %v30 = vld [vmem:[%s1 + $0x78] sm:$0xff]
    %v31 = vld [vmem:[%s0] sm:$0xff]
    %v32 = vld [vmem:[%s2] sm:$0x3]
    %v34 = vperm.slane %v32, 0
    %v35 = vperm.slane %v32, 1
    %vm38 = vcmask 523264
    %v40 = vsel %vm38, %v31, 0
    %42 = vmatpush.msra.mxu0 0.0
    %43 = vmatpush.msra.mxu0 0.0
    %44 = vmatpush.msra.mxu0 0.0
    %45 = vmatpush.msra.mxu0 0.0
    %46 = vmatpush.msra.mxu0 0.0
    %47 = vmatpush.msra.mxu0 0.0
    %48 = vmatpush.msra.mxu0 0.0
    %49 = vmatpush.msra.mxu0 0.0
    %50 = vmatpush.msra.mxu0 %v29
    %51 = vmatpush.msra.mxu0 %v27
    %52 = vmatpush.msra.mxu0 %v25
    %53 = vmatpush.msra.mxu0 %v23
    %54 = vmatpush.msra.mxu0 %v21
    %55 = vmatpush.msra.mxu0 %v19
    %56 = vmatpush.msra.mxu0 %v17
    %57 = vmatpush.msra.mxu0 %v15
    %58 = vmatmul.f32.gmra.mxu0 %v40
    %v59 = vpop.f32.mrf.mxu0
    %v60 = vadd.f32 %v34, %v59
    %61 = vdwg.mxu0
    %62 = vmatpush.msra.mxu0 0.0
    %63 = vmatpush.msra.mxu0 0.0
    %64 = vmatpush.msra.mxu0 0.0
    %65 = vmatpush.msra.mxu0 0.0
    %66 = vmatpush.msra.mxu0 0.0
    %67 = vmatpush.msra.mxu0 0.0
    %68 = vmatpush.msra.mxu0 0.0
    %69 = vmatpush.msra.mxu0 0.0
    %70 = vmatpush.msra.mxu0 %v30
    %71 = vmatpush.msra.mxu0 %v28
    %72 = vmatpush.msra.mxu0 %v26
    %73 = vmatpush.msra.mxu0 %v24
    %74 = vmatpush.msra.mxu0 %v22
    %75 = vmatpush.msra.mxu0 %v20
    %76 = vmatpush.msra.mxu0 %v18
    %77 = vmatpush.msra.mxu0 %v16
    %78 = vmatmul.f32.gmra.mxu0 %v40
    %v79 = vpop.f32.mrf.mxu0
    %v80 = vadd.f32 %v35, %v79
    %81 = vdwg.mxu0
    %82 = vst [vmem:[#allocation2] sm:$0xff] %v60
    %83 = vst [vmem:[#allocation2 + $0x8] sm:$0xff] %v80
    // Predicated region
    $region14: #{decoder_forward.3} parent=1 // pred_check
      _
    $region15: #{decoder_forward.3} parent=1 // pred_check_branch
      %85 = sbr.rel (0) target = $region17
    $region16: #{decoder_forward.3} parent=1 // pred_region
      %87 = vsyncadd [#allocation3], 0
      %s89 = sshll.u32 [#allocation2], 4
      %s90 = int_to_ptr.vmem [resolvable:$true] %s89
      %s91 = sshll.u32 %s3, 4
      %s92 = int_to_ptr.hbm [resolvable:$true] %s91
      %94 = dma.vmem_to_hbm [thread:$0]  %s90, 256, %s92, [#allocation3]
    $region17: #{decoder_forward.3} parent=1 // pred_fallthru
      _
    // Predicated region
    $region18: #{decoder_forward.3} parent=1 // pred_check
      _
    $region19: #{decoder_forward.3} parent=1 // pred_check_branch
      %96 = sbr.rel (0) target = $region21
    $region20: #{decoder_forward.3} parent=1 // pred_region
      %98 = dma.done [#allocation3], 256
    $region21: #{decoder_forward.3} parent=1 // pred_fallthru
      _
    %99 = vsyncpa [#allocation3], 1

</llo_original>
